<compile_context>
chip_gen: v6e
topology: v6e:2x2x1
jax: 0.10.0
libtpu: 0.0.40
codegen_flags: <defaults>
</compile_context>

<pallas_src>
import math
from functools import partial

import jax
import jax.numpy as jnp
from jax.experimental import pallas as pl
from jax.experimental.pallas import tpu as pltpu


def _build_pe(d_model: int, max_len: int = 5000) -> jnp.ndarray:
    """Deterministic positional-encoding buffer, identical to the PyTorch init (f32)."""
    position = jnp.arange(max_len, dtype=jnp.float32)[:, None]               # (max_len, 1)
    div_term = jnp.exp(jnp.arange(0, d_model, 2, dtype=jnp.float32)
                       * (-math.log(10000.0) / d_model))                     # (d_model/2,)
    pe = jnp.zeros((max_len, 1, d_model), dtype=jnp.float32)
    pe = pe.at[:, 0, 0::2].set(jnp.sin(position * div_term))
    pe = pe.at[:, 0, 1::2].set(jnp.cos(position * div_term))
    return pe


def _add_pe_kernel(x_ref, pe_ref, o_ref, *, batch: int):
    # x_ref/o_ref: (TS, batch*d_model) tile; pe_ref: (TS, d_model) f32 tile.
    # Build the lane-broadcast pe tile once per grid step (XLU/VPU have huge slack
    # in this add-only kernel) and emit a single full-width dense store.
    pe = pe_ref[...].astype(jnp.float32)                     # (TS, d_model), f32 compute
    if batch > 1:
        pe = jnp.concatenate([pe] * batch, axis=1)           # (TS, batch*d_model)
    o_ref[...] = (x_ref[...].astype(jnp.float32) + pe).astype(o_ref.dtype)


def _pick_vmem_limit() -> int:
    # ~64 MiB scoped limit on v5e/v6e (128 MiB physical), ~48 MiB on v7x (64 MiB physical).
    try:
        cap = int(pltpu.get_tpu_info().vmem_capacity_bytes)
        return min(64 * 1024 * 1024, (cap * 3) // 4)
    except Exception:
        return 48 * 1024 * 1024


def positional_encoding_forward(x: jnp.ndarray, pe: jnp.ndarray,
                                *, target_tile_bytes: int = 8 << 20,
                                donate_x: bool = False) -> jnp.ndarray:
    """x: (seq, batch, d_model); pe: (max_len, 1, d_model) or (max_len, d_model) f32 buffer.

    Returns x + pe[:seq] (computed in f32, result cast back to x.dtype).
    """
    seq, batch, d_model = x.shape
    if pe.ndim == 3:
        # Metadata-only squeeze of the unit batch dim (not an HBM slice/cast pass).
        pe = pe.reshape(pe.shape[0], pe.shape[-1])
    assert pe.shape[0] >= seq and pe.shape[1] == d_model

    itemsize = jnp.dtype(x.dtype).itemsize
    x_2d = x.reshape(seq, batch * d_model)          # free row-major reshape, lane-dense view

    # Seq tile: ~target_tile_bytes per x tile, multiple of 8 sublanes.
    row_bytes = batch * d_model * itemsize
    ts = max(8, (max(1, target_tile_bytes // row_bytes) // 8) * 8)
    if seq >= 16:
        # Guarantee >=2 grid steps (v7x dual-TC sharding + DMA pipeline), 8-aligned.
        ts = min(ts, ((pl.cdiv(seq, 2) + 7) // 8) * 8)
    ts = min(ts, seq)                               # full-extent block is always legal
    grid = (pl.cdiv(seq, ts),)

    # TODO(synk): pathologically wide rows (8*batch*d_model*itemsize > VMEM limit)
    # would need a second lane-dim grid axis; not handled here.

    cost = pl.CostEstimate(
        flops=seq * batch * d_model,
        transcendentals=0,
        bytes_accessed=2 * x.size * itemsize + seq * d_model * jnp.dtype(pe.dtype).itemsize,
    )

    out_2d = pl.pallas_call(
        partial(_add_pe_kernel, batch=batch),
        out_shape=jax.ShapeDtypeStruct((seq, batch * d_model), x.dtype),
        grid=grid,
        in_specs=[
            pl.BlockSpec((ts, batch * d_model), lambda i: (i, 0)),
            # pe [:seq] window comes from the index_map; 1/batch of x's HBM traffic.
            pl.BlockSpec((ts, d_model), lambda i: (i, 0)),
        ],
        out_specs=pl.BlockSpec((ts, batch * d_model), lambda i: (i, 0)),
        compiler_params=pltpu.CompilerParams(
            dimension_semantics=("parallel",),       # shard seq tiles across v7x's 2 TCs
            vmem_limit_bytes=_pick_vmem_limit(),
        ),
        cost_estimate=cost,
        input_output_aliases=({0: 0} if donate_x else {}),
    )(x_2d, pe)

    return out_2d.reshape(seq, batch, d_model)


if __name__ == "__main__":
    key = jax.random.PRNGKey(0)

    # (seq, batch, d_model, target_tile_bytes) -- small shapes; the tiny tile
    # targets force multi-tile grids so the pipelined / dual-core path is exercised.
    cases = [
        (8, 2, 32, 8 << 20),   # default-style tiling, single full-extent block
        (16, 4, 32, 4096),     # lane-dense (batch*d_model = 128), 2 seq tiles
        (20, 2, 32, 4096),     # uneven seq -> ragged/masked last block
    ]

    for seq, batch, d_model, tgt in cases:
        key, sub = jax.random.split(key)
        x = jax.random.normal(sub, (seq, batch, d_model), dtype=jnp.float32)
        pe = _build_pe(d_model, max_len=64)          # deterministic buffer, no checkpoint

        out = positional_encoding_forward(x, pe, target_tile_bytes=tgt)
        jax.block_until_ready(out)

        ref = x + pe[:seq]                           # pure-JAX reference (same as PyTorch)
        assert out.shape == (seq, batch, d_model)
        assert jnp.allclose(out, ref, atol=1e-6), f"mismatch vs reference for {x.shape}"

    print("KERNEL_OK")
</pallas_src>

<mosaic_0001>
module attributes {stable_mosaic.version = 11 : i64} {
  func.func @_add_pe_kernel(%arg0: i32, %arg1: memref<8x64xf32, #tpu.memory_space<vmem>>, %arg2: memref<8x32xf32, #tpu.memory_space<vmem>>, %arg3: memref<8x64xf32, #tpu.memory_space<vmem>>) attributes {dimension_semantics = [#tpu.dimension_semantics<parallel>], iteration_bounds = array<i64: 1>, scalar_prefetch = 0 : i64, scratch_operands = 0 : i64, tpu.core_type = #tpu.core_type<tc>, window_params = [{transform_indices = @transform_0, window_bounds = array<i64: 8, 64>}, {transform_indices = @transform_1, window_bounds = array<i64: 8, 32>}, {transform_indices = @transform_2, window_bounds = array<i64: 8, 64>}]} {
    %c0 = arith.constant 0 : index
    %c0_0 = arith.constant 0 : index
    %0 = vector.load %arg2[%c0, %c0_0] : memref<8x32xf32, #tpu.memory_space<vmem>>, vector<8x32xf32>
    %1 = tpu.concatenate %0, %0 in 1 : vector<8x32xf32>, vector<8x32xf32> -> vector<8x64xf32>
    %c0_1 = arith.constant 0 : index
    %c0_2 = arith.constant 0 : index
    %2 = vector.load %arg1[%c0_1, %c0_2] : memref<8x64xf32, #tpu.memory_space<vmem>>, vector<8x64xf32>
    %3 = arith.addf %2, %1 : vector<8x64xf32>
    %c0_3 = arith.constant 0 : index
    %c0_4 = arith.constant 0 : index
    %4 = vector.load %arg3[%c0_3, %c0_4] : memref<8x64xf32, #tpu.memory_space<vmem>>, vector<8x64xf32>
    tpu.vector_store %arg3[%c0_3, %c0_4], %3 {strides = array<i32>} : memref<8x64xf32, #tpu.memory_space<vmem>>, vector<8x64xf32>,
    return
  }
  func.func @transform_0(%arg0: i32) -> (i32, i32) {
    %c0_i32 = arith.constant 0 : i32
    %c0_i32_0 = arith.constant 0 : i32
    return %arg0, %c0_i32 : i32, i32
  }
  func.func @transform_1(%arg0: i32) -> (i32, i32) {
    %c0_i32 = arith.constant 0 : i32
    %c0_i32_0 = arith.constant 0 : i32
    return %arg0, %c0_i32 : i32, i32
  }
  func.func @transform_2(%arg0: i32) -> (i32, i32) {
    %c0_i32 = arith.constant 0 : i32
    %c0_i32_0 = arith.constant 0 : i32
    return %arg0, %c0_i32 : i32, i32
  }
}

</mosaic_0001>

<llo_original>
// kernel: tpu_custom_call.1
$region0: #{tpu_custom_call.1}
  #allocation0 [shape = 'u32[]', space=smem, size = 0x4, offset = 0x4, fixed_abs, tag = 'smem constant byte address 0x4 - core index']
  #allocation1 [shape = 'u32[144,128]{1,0:T(1,128)}', space=vmem, size = 0x12000, scoped, tag = 'internal scratch']
  %s0 = inlined_call_operand.vmem [shape: f32[8,64], index: 0, kind: input, shape index: {}]
  %s1 = inlined_call_operand.vmem [shape: f32[64,32], index: 1, kind: input, shape index: {}]
  %s2 = inlined_call_operand.hbm [shape: f32[8,64], index: 2, kind: output, shape index: {}]
  %s3 = sld [smem:[#allocation0]]
  $region18: #{tpu_custom_call.1} parent=0
    _
  %s5 = ssub.s32 1, %s3
  %s6 = scalar_select 0, %s5, %s3
  $region1: #{tpu_custom_call.1} parent=0
    #allocation2 [shape = 'u8[4096]{0}', space=vmem, size = 0x1000, scoped, tag = 'output window, operand 0, single buffered']
    #allocation3 [shape = 's32[1]{0}', space=sflag, size = 0x4, scoped, tag = 'scoped memory for tpu_custom_call.1']
    %7 = vsyncpa [#allocation3], 0
    // Predicated region
    $region2: #{tpu_custom_call.1} parent=1 // pred_check
      _
    $region3: #{tpu_custom_call.1} parent=1 // pred_check_branch
      %9 = sbr.rel (0) target = $region5
    $region4: #{tpu_custom_call.1} parent=1 // pred_region
      _
    $region5: #{tpu_custom_call.1} parent=1 // pred_fallthru
      _
    // Predicated region
    $region6: #{tpu_custom_call.1} parent=1 // pred_check
      _
    $region7: #{tpu_custom_call.1} parent=1 // pred_check_branch
      %11 = sbr.rel (0) target = $region9
    $region8: #{tpu_custom_call.1} parent=1 // pred_region
      _
    $region9: #{tpu_custom_call.1} parent=1 // pred_fallthru
      _
    %v12 = vld [vmem:[%s1] sm:$0xff]
    %14 = vrot.lane.b32.xlu0 %v12, 32
    %v15 = vpop.permute.xlu0 %14
    %vm17 = vcmask 261120
    %v18 = vsel %vm17, %v12, %v15
    %v19 = vld [vmem:[%s0] sm:$0xff]
    %v20 = vadd.f32 %v19, %v18
    %vm21 = vcmask 523264
    %22 = vst.msk [vmem:[#allocation2] sm:$0xff] %vm21, %v20
    // Predicated region
    $region10: #{tpu_custom_call.1} parent=1 // pred_check
      _
    $region11: #{tpu_custom_call.1} parent=1 // pred_check_branch
      %24 = sbr.rel (0) target = $region13
    $region12: #{tpu_custom_call.1} parent=1 // pred_region
      %s26 = ssub.s32 128, 128
      %27 = vsyncadd [#allocation3], %s26
      %s29 = sshll.u32 [#allocation2], 4
      %s30 = int_to_ptr.vmem [resolvable:$true] %s29
      %32 = dma.vmem_to_hbm [thread:$0]  %s30, 128, %s2, [#allocation3]
    $region13: #{tpu_custom_call.1} parent=1 // pred_fallthru
      _
    // Predicated region
    $region14: #{tpu_custom_call.1} parent=1 // pred_check
      _
    $region15: #{tpu_custom_call.1} parent=1 // pred_check_branch
      %34 = sbr.rel (0) target = $region17
    $region16: #{tpu_custom_call.1} parent=1 // pred_region
      %35 = dma.done [#allocation3], 128
    $region17: #{tpu_custom_call.1} parent=1 // pred_fallthru
      _
    %36 = vsyncpa [#allocation3], 1

</llo_original>
